<compile_context>
chip_gen: v7x
topology: tpu7x:2x2x1
jax: 0.10.0
libtpu: 0.0.40
codegen_flags: <defaults>
</compile_context>

<pallas_src>
import jax
import jax.numpy as jnp
from jax import lax
from jax.experimental import pallas as pl
from jax.experimental.pallas import tpu as pltpu


# ---------------------------------------------------------------------------
# Kernel
# ---------------------------------------------------------------------------
def _resblock_kernel(x_ref, w1r_ref, w2_ref,
                     s1_ref, b1_ref, s2_ref, b2_ref, sr_ref, br_ref,
                     out_ref):
    # x_ref  : (Bt, H, W*CinP)      f32, channels folded into lanes (128-wide).
    # w1r_ref: (3*W*CinP, 2*W*Cout) bf16 fused [conv1 block-Toeplitz | residual].
    # w2_ref : (3*W*Cout, W*Cout)   bf16 block-Toeplitz conv2 weight.
    # s*/b*  : (1, W*Cout)          f32 folded conv-bias+BN scale / bias.
    # out_ref: (Bt, H, W*Cout)      f32.
    Bt, H, WCin = x_ref.shape
    WCout = out_ref.shape[-1]

    # Single bf16 cast of the input, shared by conv1 and the fused residual.
    x16 = x_ref[...].astype(jnp.bfloat16)                     # (Bt, H, WCin)
    zx = jnp.zeros_like(x16[:, :1, :])
    # Row taps of the pad=1 conv, shifted PER IMAGE (axis=1) so rows never leak
    # across batch-image boundaries; operands built directly in bf16.
    a1 = jnp.concatenate(
        [jnp.concatenate([zx, x16[:, :-1, :]], axis=1),       # dy=0 (row above)
         x16,                                                  # dy=1 (center)
         jnp.concatenate([x16[:, 1:, :], zx], axis=1)],        # dy=2 (row below)
        axis=2).reshape(Bt * H, 3 * WCin)

    # ONE fused MXU matmul: lanes [:WCout] = conv1, lanes [WCout:] = residual
    # 1x1 conv (its block-diagonal weight only taps the un-shifted middle slab).
    y = jnp.dot(a1, w1r_ref[...], preferred_element_type=jnp.float32)
    y1 = y[:, :WCout]
    yr = y[:, WCout:]

    # BN1 (folded, incl. conv bias) + ReLU; Dropout = identity in eval mode.
    h1 = jnp.maximum(y1 * s1_ref[...] + b1_ref[...], 0.0)

    # conv2 (3x3, pad 1): cast once to bf16, per-image shifts, one matmul.
    h16 = h1.astype(jnp.bfloat16).reshape(Bt, H, WCout)
    zh = jnp.zeros_like(h16[:, :1, :])
    a2 = jnp.concatenate(
        [jnp.concatenate([zh, h16[:, :-1, :]], axis=1),
         h16,
         jnp.concatenate([h16[:, 1:, :], zh], axis=1)],
        axis=2).reshape(Bt * H, 3 * WCout)
    y2 = jnp.dot(a2, w2_ref[...], preferred_element_type=jnp.float32)
    y2 = y2 * s2_ref[...] + b2_ref[...]                        # BN2 folded

    yr = yr * sr_ref[...] + br_ref[...]                        # res BN folded

    # Final add + ReLU, dense (Bt*H, 128)-lane store.
    out = jnp.maximum(y2 + yr, 0.0)
    out_ref[...] = out.reshape(Bt, H, WCout).astype(out_ref.dtype)


def resblock_pallas(x_nhwc, params, *, b_tile=None):
    """x_nhwc: (N, H, W, Cin) float32.  Returns (N, H, W, Cout) float32."""
    N, H, W, Cin = x_nhwc.shape
    w1r, w2 = params["w1r"], params["w2"]
    WCout = w2.shape[1]
    Cout = WCout // W
    WCinP = w1r.shape[0] // 3
    CinP = WCinP // W
    assert CinP >= Cin

    # Batch tile: raise matmul M = b_tile*H, but keep >=2 grid steps when N>=2
    # so the batch axis still shards across v7x's 2 TensorCores.
    if b_tile is None:
        cap = max(1, 512 // H)                       # keep M <= 512 per step
        b_tile = max(1, min(N // 2 if N >= 2 else 1, cap))
        while N % b_tile:
            b_tile -= 1
    assert N % b_tile == 0
    steps = N // b_tile

    # Zero-pad Cin -> CinP (=8) so W*CinP = 128 lanes; zero channels contribute
    # nothing (matching weight rows are zero).  Channels fold into lanes.
    xp = jnp.pad(x_nhwc, ((0, 0), (0, 0), (0, 0), (0, CinP - Cin)))
    x2d = xp.reshape(N, H, WCinP)

    const2d = lambda shape: pl.BlockSpec(shape, lambda n: (0, 0))

    M = N * H
    flops = 2 * M * (3 * WCinP) * (2 * WCout) + 2 * M * (3 * WCout) * WCout
    bytes_accessed = (M * WCinP * 4 + M * WCout * 4
                      + int(w1r.size) * 2 + int(w2.size) * 2 + 6 * WCout * 4)

    out2d = pl.pallas_call(
        _resblock_kernel,
        out_shape=jax.ShapeDtypeStruct((N, H, WCout), jnp.float32),
        grid_spec=pltpu.PrefetchScalarGridSpec(
            num_scalar_prefetch=0,
            grid=(steps,),
            in_specs=[
                pl.BlockSpec((b_tile, H, WCinP), lambda n: (n, 0, 0)),
                const2d((3 * WCinP, 2 * WCout)),     # fused conv1 + residual
                const2d((3 * WCout, WCout)),         # conv2 block-Toeplitz
                const2d((1, WCout)), const2d((1, WCout)),   # s1, b1
                const2d((1, WCout)), const2d((1, WCout)),   # s2, b2
                const2d((1, WCout)), const2d((1, WCout)),   # sr, br
            ],
            out_specs=pl.BlockSpec((b_tile, H, WCout), lambda n: (n, 0, 0)),
        ),
        compiler_params=pltpu.CompilerParams(
            dimension_semantics=("parallel",)),      # batch -> both TCs on v7x
        cost_estimate=pl.CostEstimate(flops=flops, transcendentals=0,
                                      bytes_accessed=bytes_accessed),
    )(x2d, w1r, w2,
      params["s1"], params["b1"], params["s2"], params["b2"],
      params["sr"], params["br"])

    return out2d.reshape(N, H, W, Cout)


# ---------------------------------------------------------------------------
# Parameter construction (deterministic) + pure-JAX reference for validation.
# ---------------------------------------------------------------------------
def _toeplitz_conv_w(w_hwio, W):
    """(3,3,Ci,Co) HWIO -> (3*W*Ci, W*Co) block-Toeplitz weight.
    Row index = dy*W*Ci + w_in*Ci + ci ; col index = w_out*Co + co.
    W-direction taps + zero-padding folded in; dy taps stay stacked along K."""
    kh, kw, Ci, Co = w_hwio.shape
    B = jnp.zeros((kh, W, Ci, W, Co), jnp.float32)
    for dx in range(kw):
        for w_out in range(W):
            w_in = w_out + dx - 1
            if 0 <= w_in < W:
                B = B.at[:, w_in, :, w_out, :].set(w_hwio[:, dx, :, :])
    return B.reshape(kh * W * Ci, W * Co)


def _block_diag_w(w_io, W):
    """(Ci,Co) 1x1 conv -> (W*Ci, W*Co) block-diagonal weight."""
    Ci, Co = w_io.shape
    B = jnp.zeros((W, Ci, W, Co), jnp.float32)
    for w in range(W):
        B = B.at[w, :, w, :].set(w_io)
    return B.reshape(W * Ci, W * Co)


def _fused_conv1_res_w(w1_hwio, wr_io, W):
    """Fuse conv1 Toeplitz and residual block-diag into one (3*W*Ci, 2*W*Co)
    weight.  The residual occupies the middle (un-shifted, dy=1) row block of
    the conv1 operand, columns [W*Co : 2*W*Co]."""
    _, _, Ci, Co = w1_hwio.shape
    WCi, WCo = W * Ci, W * Co
    fused = jnp.zeros((3 * WCi, 2 * WCo), jnp.float32)
    fused = fused.at[:, :WCo].set(_toeplitz_conv_w(w1_hwio, W))
    fused = fused.at[WCi:2 * WCi, WCo:].set(_block_diag_w(wr_io, W))
    return fused


def make_params(key, in_dim, out_dim, W, cin_pad=8):
    ks = jax.random.split(key, 9)
    # PyTorch conv weights are OIHW (with bias); generate in that convention.
    w1_oihw = jax.random.normal(ks[0], (out_dim, in_dim, 3, 3), jnp.float32) * 0.2
    w2_oihw = jax.random.normal(ks[1], (out_dim, out_dim, 3, 3), jnp.float32) * 0.2
    wr_oihw = jax.random.normal(ks[2], (out_dim, in_dim, 1, 1), jnp.float32) * 0.2
    cb1 = 0.1 * jax.random.normal(ks[3], (out_dim,), jnp.float32)
    cb2 = 0.1 * jax.random.normal(ks[4], (out_dim,), jnp.float32)
    cbr = 0.1 * jax.random.normal(ks[5], (out_dim,), jnp.float32)

    def bn_stats(k):
        kg, kb, km, kv = jax.random.split(k, 4)
        gamma = 1.0 + 0.1 * jax.random.normal(kg, (out_dim,), jnp.float32)
        beta = 0.1 * jax.random.normal(kb, (out_dim,), jnp.float32)
        mean = 0.1 * jax.random.normal(km, (out_dim,), jnp.float32)
        var = jnp.abs(jax.random.normal(kv, (out_dim,), jnp.float32)) + 0.5
        return gamma, beta, mean, var

    bn1, bn2, bnr = bn_stats(ks[6]), bn_stats(ks[7]), bn_stats(ks[8])

    def fold(bn, conv_bias, eps=1e-5):
        gamma, beta, mean, var = bn
        scale = gamma / jnp.sqrt(var + eps)
        bias = beta + (conv_bias - mean) * scale
        return scale[None, :], bias[None, :]

    s1, b1 = fold(bn1, cb1)
    s2, b2 = fold(bn2, cb2)
    sr, br = fold(bnr, cbr)

    # OIHW -> HWIO / IO
    w1_hwio = jnp.transpose(w1_oihw, (2, 3, 1, 0))            # (3,3,Cin,Cout)
    w2_hwio = jnp.transpose(w2_oihw, (2, 3, 1, 0))            # (3,3,Cout,Cout)
    wr_hwio = jnp.transpose(wr_oihw, (2, 3, 1, 0))            # (1,1,Cin,Cout)
    wr_io = wr_hwio[0, 0]                                     # (Cin,Cout)

    # Zero-pad Cin -> cin_pad so W*cin_pad is 128-lane aligned in the kernel.
    pad_ci = cin_pad - in_dim
    w1_hwio_p = jnp.pad(w1_hwio, ((0, 0), (0, 0), (0, pad_ci), (0, 0)))
    wr_io_p = jnp.pad(wr_io, ((0, pad_ci), (0, 0)))

    tile = lambda v: jnp.tile(v, (1, W))                      # (1,Co)->(1,W*Co)
    params = dict(
        w1r=_fused_conv1_res_w(w1_hwio_p, wr_io_p, W).astype(jnp.bfloat16),
        w2=_toeplitz_conv_w(w2_hwio, W).astype(jnp.bfloat16),
        s1=tile(s1), b1=tile(b1), s2=tile(s2), b2=tile(b2),
        sr=tile(sr), br=tile(br),
    )
    ref_params = dict(w1=w1_hwio, w2=w2_hwio, wr=wr_hwio,
                      cb1=cb1, cb2=cb2, cbr=cbr,
                      bn1=bn1, bn2=bn2, bnr=bnr)
    return params, ref_params


def resblock_reference(x_nhwc, p, eps=1e-5):
    """Unfolded eval-mode reference (conv+bias -> BN running stats)."""
    def conv(x, w, b):
        pad = (w.shape[0] - 1) // 2
        y = lax.conv_general_dilated(
            x, w, (1, 1), [(pad, pad), (pad, pad)],
            dimension_numbers=("NHWC", "HWIO", "NHWC"))
        return y + b

    def bn(x, stats):
        gamma, beta, mean, var = stats
        return (x - mean) * (gamma / jnp.sqrt(var + eps)) + beta

    h = bn(conv(x_nhwc, p["w1"], p["cb1"]), p["bn1"])
    h = jnp.maximum(h, 0.0)                  # ReLU; Dropout = identity (eval)
    h = bn(conv(h, p["w2"], p["cb2"]), p["bn2"])
    r = bn(conv(x_nhwc, p["wr"], p["cbr"]), p["bnr"])
    return jnp.maximum(h + r, 0.0)


if __name__ == "__main__":
    # stride=1, in_dim != out_dim -> 1x1 residual conv active (as in the module).
    # N=4 so the default b_tile=2 exercises batch-in-M with per-image shifts
    # AND keeps 2 parallel grid steps (one per v7x TensorCore).
    N, Cin, Cout, H, W = 4, 4, 8, 16, 16

    key = jax.random.PRNGKey(0)
    kx, kp = jax.random.split(key)
    # Inputs conceptually NCHW (PyTorch); convert to NHWC kernel layout.
    x_nchw = jax.random.normal(kx, (N, Cin, H, W), jnp.float32)
    x_nhwc = jnp.transpose(x_nchw, (0, 2, 3, 1))

    params, ref_params = make_params(kp, Cin, Cout, W)

    out = jax.block_until_ready(resblock_pallas(x_nhwc, params))
    ref = jax.block_until_ready(resblock_reference(x_nhwc, ref_params))

    assert out.shape == (N, H, W, Cout)
    # bf16 MXU inputs through two convs -> loose tolerance for inference.
    max_err = float(jnp.max(jnp.abs(out - ref)))
    assert jnp.allclose(out, ref, rtol=5e-2, atol=5e-2), max_err

    print("KERNEL_OK")
</pallas_src>

<mosaic_0001>
module attributes {stable_mosaic.version = 11 : i64} {
  func.func @_resblock_kernel(%arg0: i32, %arg1: memref<2x16x128xf32, #tpu.memory_space<vmem>>, %arg2: memref<384x256xbf16, #tpu.memory_space<vmem>>, %arg3: memref<384x128xbf16, #tpu.memory_space<vmem>>, %arg4: memref<1x128xf32, #tpu.memory_space<vmem>>, %arg5: memref<1x128xf32, #tpu.memory_space<vmem>>, %arg6: memref<1x128xf32, #tpu.memory_space<vmem>>, %arg7: memref<1x128xf32, #tpu.memory_space<vmem>>, %arg8: memref<1x128xf32, #tpu.memory_space<vmem>>, %arg9: memref<1x128xf32, #tpu.memory_space<vmem>>, %arg10: memref<2x16x128xf32, #tpu.memory_space<vmem>>) attributes {dimension_semantics = [#tpu.dimension_semantics<parallel>], iteration_bounds = array<i64: 2>, scalar_prefetch = 0 : i64, scratch_operands = 0 : i64, tpu.core_type = #tpu.core_type<tc>, window_params = [{transform_indices = @transform_0, window_bounds = array<i64: 2, 16, 128>}, {pipeline_mode = #tpu.pipeline_mode<synchronous>, transform_indices = @transform_1, window_bounds = array<i64: 384, 256>}, {pipeline_mode = #tpu.pipeline_mode<synchronous>, transform_indices = @transform_2, window_bounds = array<i64: 384, 128>}, {pipeline_mode = #tpu.pipeline_mode<synchronous>, transform_indices = @transform_3, window_bounds = array<i64: 1, 128>}, {pipeline_mode = #tpu.pipeline_mode<synchronous>, transform_indices = @transform_4, window_bounds = array<i64: 1, 128>}, {pipeline_mode = #tpu.pipeline_mode<synchronous>, transform_indices = @transform_5, window_bounds = array<i64: 1, 128>}, {pipeline_mode = #tpu.pipeline_mode<synchronous>, transform_indices = @transform_6, window_bounds = array<i64: 1, 128>}, {pipeline_mode = #tpu.pipeline_mode<synchronous>, transform_indices = @transform_7, window_bounds = array<i64: 1, 128>}, {pipeline_mode = #tpu.pipeline_mode<synchronous>, transform_indices = @transform_8, window_bounds = array<i64: 1, 128>}, {transform_indices = @transform_9, window_bounds = array<i64: 2, 16, 128>}]} {
    %c0 = arith.constant 0 : index
    %c0_0 = arith.constant 0 : index
    %c0_1 = arith.constant 0 : index
    %0 = vector.load %arg1[%c0, %c0_0, %c0_1] : memref<2x16x128xf32, #tpu.memory_space<vmem>>, vector<2x16x128xf32>
    %1 = arith.truncf %0 : vector<2x16x128xf32> to vector<2x16x128xbf16>
    %cst = arith.constant 0.000000e+00 : bf16
    %2 = vector.broadcast %cst : bf16 to vector<2x1x128xbf16>
    %3 = vector.extract_strided_slice %1 {offsets = [0, 0, 0], sizes = [2, 15, 128], strides = [1, 1, 1]} : vector<2x16x128xbf16> to vector<2x15x128xbf16>
    %4 = tpu.concatenate %2, %3 in 1 : vector<2x1x128xbf16>, vector<2x15x128xbf16> -> vector<2x16x128xbf16>
    %5 = vector.extract_strided_slice %1 {offsets = [0, 1, 0], sizes = [2, 15, 128], strides = [1, 1, 1]} : vector<2x16x128xbf16> to vector<2x15x128xbf16>
    %6 = tpu.concatenate %5, %2 in 1 : vector<2x15x128xbf16>, vector<2x1x128xbf16> -> vector<2x16x128xbf16>
    %7 = tpu.concatenate %4, %1, %6 in 2 : vector<2x16x128xbf16>, vector<2x16x128xbf16>, vector<2x16x128xbf16> -> vector<2x16x384xbf16>
    %8 = vector.shape_cast %7 : vector<2x16x384xbf16> to vector<32x384xbf16>
    %c0_2 = arith.constant 0 : index
    %c0_3 = arith.constant 0 : index
    %9 = vector.load %arg2[%c0_2, %c0_3] : memref<384x256xbf16, #tpu.memory_space<vmem>>, vector<384x256xbf16>
    %cst_4 = arith.constant dense<0.000000e+00> : vector<32x256xf32>
    %10 = tpu.matmul %8, %9, %cst_4 {dimension_numbers = #tpu.dot_dimension_numbers<[1], [0], [0], [1], [0, 0, 1, 1], [], []>} : vector<32x384xbf16>, vector<384x256xbf16>, vector<32x256xf32> -> vector<32x256xf32>
    %11 = vector.extract_strided_slice %10 {offsets = [0, 0], sizes = [32, 128], strides = [1, 1]} : vector<32x256xf32> to vector<32x128xf32>
    %12 = vector.extract_strided_slice %10 {offsets = [0, 128], sizes = [32, 128], strides = [1, 1]} : vector<32x256xf32> to vector<32x128xf32>
    %c0_5 = arith.constant 0 : index
    %c0_6 = arith.constant 0 : index
    %13 = vector.load %arg4[%c0_5, %c0_6] : memref<1x128xf32, #tpu.memory_space<vmem>>, vector<1x128xf32>
    %14 = vector.broadcast %13 : vector<1x128xf32> to vector<32x128xf32>
    %15 = arith.mulf %11, %14 : vector<32x128xf32>
    %c0_7 = arith.constant 0 : index
    %c0_8 = arith.constant 0 : index
    %16 = vector.load %arg5[%c0_7, %c0_8] : memref<1x128xf32, #tpu.memory_space<vmem>>, vector<1x128xf32>
    %17 = vector.broadcast %16 : vector<1x128xf32> to vector<32x128xf32>
    %18 = arith.addf %15, %17 : vector<32x128xf32>
    %cst_9 = arith.constant 0.000000e+00 : f32
    %19 = vector.broadcast %cst_9 : f32 to vector<32x128xf32>
    %20 = arith.maximumf %18, %19 : vector<32x128xf32>
    %21 = arith.truncf %20 : vector<32x128xf32> to vector<32x128xbf16>
    %22 = vector.shape_cast %21 : vector<32x128xbf16> to vector<2x16x128xbf16>
    %cst_10 = arith.constant 0.000000e+00 : bf16
    %23 = vector.broadcast %cst_10 : bf16 to vector<2x1x128xbf16>
    %24 = vector.extract_strided_slice %22 {offsets = [0, 0, 0], sizes = [2, 15, 128], strides = [1, 1, 1]} : vector<2x16x128xbf16> to vector<2x15x128xbf16>
    %25 = tpu.concatenate %23, %24 in 1 : vector<2x1x128xbf16>, vector<2x15x128xbf16> -> vector<2x16x128xbf16>
    %26 = vector.extract_strided_slice %22 {offsets = [0, 1, 0], sizes = [2, 15, 128], strides = [1, 1, 1]} : vector<2x16x128xbf16> to vector<2x15x128xbf16>
    %27 = tpu.concatenate %26, %23 in 1 : vector<2x15x128xbf16>, vector<2x1x128xbf16> -> vector<2x16x128xbf16>
    %28 = tpu.concatenate %25, %22, %27 in 2 : vector<2x16x128xbf16>, vector<2x16x128xbf16>, vector<2x16x128xbf16> -> vector<2x16x384xbf16>
    %29 = vector.shape_cast %28 : vector<2x16x384xbf16> to vector<32x384xbf16>
    %c0_11 = arith.constant 0 : index
    %c0_12 = arith.constant 0 : index
    %30 = vector.load %arg3[%c0_11, %c0_12] : memref<384x128xbf16, #tpu.memory_space<vmem>>, vector<384x128xbf16>
    %cst_13 = arith.constant dense<0.000000e+00> : vector<32x128xf32>
    %31 = tpu.matmul %29, %30, %cst_13 {dimension_numbers = #tpu.dot_dimension_numbers<[1], [0], [0], [1], [0, 0, 1, 1], [], []>} : vector<32x384xbf16>, vector<384x128xbf16>, vector<32x128xf32> -> vector<32x128xf32>
    %c0_14 = arith.constant 0 : index
    %c0_15 = arith.constant 0 : index
    %32 = vector.load %arg6[%c0_14, %c0_15] : memref<1x128xf32, #tpu.memory_space<vmem>>, vector<1x128xf32>
    %33 = vector.broadcast %32 : vector<1x128xf32> to vector<32x128xf32>
    %34 = arith.mulf %31, %33 : vector<32x128xf32>
    %c0_16 = arith.constant 0 : index
    %c0_17 = arith.constant 0 : index
    %35 = vector.load %arg7[%c0_16, %c0_17] : memref<1x128xf32, #tpu.memory_space<vmem>>, vector<1x128xf32>
    %36 = vector.broadcast %35 : vector<1x128xf32> to vector<32x128xf32>
    %37 = arith.addf %34, %36 : vector<32x128xf32>
    %c0_18 = arith.constant 0 : index
    %c0_19 = arith.constant 0 : index
    %38 = vector.load %arg8[%c0_18, %c0_19] : memref<1x128xf32, #tpu.memory_space<vmem>>, vector<1x128xf32>
    %39 = vector.broadcast %38 : vector<1x128xf32> to vector<32x128xf32>
    %40 = arith.mulf %12, %39 : vector<32x128xf32>
    %c0_20 = arith.constant 0 : index
    %c0_21 = arith.constant 0 : index
    %41 = vector.load %arg9[%c0_20, %c0_21] : memref<1x128xf32, #tpu.memory_space<vmem>>, vector<1x128xf32>
    %42 = vector.broadcast %41 : vector<1x128xf32> to vector<32x128xf32>
    %43 = arith.addf %40, %42 : vector<32x128xf32>
    %44 = arith.addf %37, %43 : vector<32x128xf32>
    %cst_22 = arith.constant 0.000000e+00 : f32
    %45 = vector.broadcast %cst_22 : f32 to vector<32x128xf32>
    %46 = arith.maximumf %44, %45 : vector<32x128xf32>
    %47 = vector.shape_cast %46 : vector<32x128xf32> to vector<2x16x128xf32>
    %c0_23 = arith.constant 0 : index
    %c0_24 = arith.constant 0 : index
    %c0_25 = arith.constant 0 : index
    %48 = vector.load %arg10[%c0_23, %c0_24, %c0_25] : memref<2x16x128xf32, #tpu.memory_space<vmem>>, vector<2x16x128xf32>
    tpu.vector_store %arg10[%c0_23, %c0_24, %c0_25], %47 {strides = array<i32>} : memref<2x16x128xf32, #tpu.memory_space<vmem>>, vector<2x16x128xf32>,
    return
  }
  func.func @transform_0(%arg0: i32) -> (i32, i32, i32) {
    %c0_i32 = arith.constant 0 : i32
    %c0_i32_0 = arith.constant 0 : i32
    %c0_i32_1 = arith.constant 0 : i32
    return %arg0, %c0_i32, %c0_i32_0 : i32, i32, i32
  }
  func.func @transform_1(%arg0: i32) -> (i32, i32) {
    %c0_i32 = arith.constant 0 : i32
    %c0_i32_0 = arith.constant 0 : i32
    %c0_i32_1 = arith.constant 0 : i32
    return %c0_i32, %c0_i32_0 : i32, i32
  }
  func.func @transform_2(%arg0: i32) -> (i32, i32) {
    %c0_i32 = arith.constant 0 : i32
    %c0_i32_0 = arith.constant 0 : i32
    %c0_i32_1 = arith.constant 0 : i32
    return %c0_i32, %c0_i32_0 : i32, i32
  }
  func.func @transform_3(%arg0: i32) -> (i32, i32) {
    %c0_i32 = arith.constant 0 : i32
    %c0_i32_0 = arith.constant 0 : i32
    %c0_i32_1 = arith.constant 0 : i32
    return %c0_i32, %c0_i32_0 : i32, i32
  }
  func.func @transform_4(%arg0: i32) -> (i32, i32) {
    %c0_i32 = arith.constant 0 : i32
    %c0_i32_0 = arith.constant 0 : i32
    %c0_i32_1 = arith.constant 0 : i32
    return %c0_i32, %c0_i32_0 : i32, i32
  }
  func.func @transform_5(%arg0: i32) -> (i32, i32) {
    %c0_i32 = arith.constant 0 : i32
    %c0_i32_0 = arith.constant 0 : i32
    %c0_i32_1 = arith.constant 0 : i32
    return %c0_i32, %c0_i32_0 : i32, i32
  }
  func.func @transform_6(%arg0: i32) -> (i32, i32) {
    %c0_i32 = arith.constant 0 : i32
    %c0_i32_0 = arith.constant 0 : i32
    %c0_i32_1 = arith.constant 0 : i32
    return %c0_i32, %c0_i32_0 : i32, i32
  }
  func.func @transform_7(%arg0: i32) -> (i32, i32) {
    %c0_i32 = arith.constant 0 : i32
    %c0_i32_0 = arith.constant 0 : i32
    %c0_i32_1 = arith.constant 0 : i32
    return %c0_i32, %c0_i32_0 : i32, i32
  }
  func.func @transform_8(%arg0: i32) -> (i32, i32) {
    %c0_i32 = arith.constant 0 : i32
    %c0_i32_0 = arith.constant 0 : i32
    %c0_i32_1 = arith.constant 0 : i32
    return %c0_i32, %c0_i32_0 : i32, i32
  }
  func.func @transform_9(%arg0: i32) -> (i32, i32, i32) {
    %c0_i32 = arith.constant 0 : i32
    %c0_i32_0 = arith.constant 0 : i32
    %c0_i32_1 = arith.constant 0 : i32
    return %arg0, %c0_i32, %c0_i32_0 : i32, i32, i32
  }
}

</mosaic_0001>

<llo_original>
// kernel: tpu_custom_call.1
$region0: #{tpu_custom_call.1}
  #allocation0 [shape = 'u32[]', space=smem, size = 0x4, offset = 0x4, fixed_abs, tag = 'smem constant byte address 0x4 - core index']
  #allocation1 [shape = 'u32[144,128]{1,0:T(1,128)}', space=vmem, size = 0x12000, scoped, tag = 'internal scratch']
  %s0 = inlined_call_operand.hbm [shape: f32[4,16,128], index: 0, kind: input, shape index: {}]
  %s1 = inlined_call_operand.hbm [shape: bf16[384,256], index: 1, kind: input, shape index: {}]
  %s2 = inlined_call_operand.hbm [shape: bf16[384,128], index: 2, kind: input, shape index: {}]
  %s3 = inlined_call_operand.vmem [shape: f32[1,128], index: 3, kind: input, shape index: {}]
  %s4 = inlined_call_operand.vmem [shape: f32[1,128], index: 4, kind: input, shape index: {}]
  %s5 = inlined_call_operand.vmem [shape: f32[1,128], index: 5, kind: input, shape index: {}]
  %s6 = inlined_call_operand.vmem [shape: f32[1,128], index: 6, kind: input, shape index: {}]
  %s7 = inlined_call_operand.vmem [shape: f32[1,128], index: 7, kind: input, shape index: {}]
  %s8 = inlined_call_operand.vmem [shape: f32[1,128], index: 8, kind: input, shape index: {}]
  %s9 = inlined_call_operand.hbm [shape: f32[4,16,128], index: 9, kind: output, shape index: {}]
  %s10 = sld [smem:[#allocation0]]
  $region81: #{tpu_custom_call.1} parent=0
    _
  %s12 = ssub.s32 1, %s10
  %s13 = scalar_select 0, %s12, %s10
  $region1: #{tpu_custom_call.1} parent=0
    #allocation2 [shape = 'u8[32768]{0}', space=vmem, size = 0x8000, scoped, tag = 'input window, operand 0']
    #allocation3 [shape = 's32[2]{0}', space=sflag, size = 0x8, scoped, tag = 'scoped memory for tpu_custom_call.1']
    #allocation4 [shape = 's32[2]{0}', space=sflag, size = 0x8, scoped, tag = 'scoped memory for tpu_custom_call.1']
    #allocation5 [shape = 'u8[196608]{0}', space=vmem, size = 0x30000, scoped, tag = 'input window, operand 1, single buffered']
    #allocation6 [shape = 's32[1]{0}', space=sflag, size = 0x4, scoped, tag = 'scoped memory for tpu_custom_call.1']
    #allocation7 [shape = 'u8[98304]{0}', space=vmem, size = 0x18000, scoped, tag = 'input window, operand 2, single buffered']
    #allocation8 [shape = 'u8[32768]{0}', space=vmem, size = 0x8000, scoped, tag = 'output window, operand 0']
    %14 = vsyncpa [#allocation3], 0
    %s15 = scalar_lea.sflag [#allocation3], 1
    %16 = vsyncpa %s15, 0
    %17 = vsyncpa [#allocation6], 0
    %18 = vsyncpa [#allocation4], 0
    %s19 = scalar_lea.sflag [#allocation4], 1
    %20 = vsyncpa %s19, 0
    loop: start=0, step=1, limit=4
    $region2: #{tpu_custom_call.1} parent=1 // loop_pre_header
      _
    $region3: #{tpu_custom_call.1} parent=1 // loop_header
      %s22 = sphi 0, %s26
      %p23 = scmp.ge.s32.totalorder %s22, 4
      %s32 = sphi 0, %s34
      %s35 = sphi 0, %s32
      %s36 = sphi 0, %s35
      %s52 = sphi 0, %s36
      %s56 = sphi 0, %s56
      %s58 = sphi 0, %s56
      %s59 = sphi 0, %s58
      %s73 = sphi 0, %s59
      %s77 = sphi 0, %s77
      %s79 = sphi 0, %s77
      %s80 = sphi 0, %s79
      %s94 = sphi 0, %s80
      %s98 = sphi 0, %s98
      %s100 = sphi 0, %s98
      %s101 = sphi 0, %s100
      %s115 = sphi 0, %s101
      %s119 = sphi 0, %s119
      %s121 = sphi 0, %s119
      %s122 = sphi 0, %s121
      %s136 = sphi 0, %s122
      %s140 = sphi 0, %s140
      %s142 = sphi 0, %s140
      %s143 = sphi 0, %s142
      %s157 = sphi 0, %s143
      %s161 = sphi 0, %s161
      %s163 = sphi 0, %s161
      %s164 = sphi 0, %s163
      %s178 = sphi 0, %s164
      %s182 = sphi 0, %s182
      %s184 = sphi 0, %s182
      %s185 = sphi 0, %s184
      %s199 = sphi 0, %s185
      %s203 = sphi 0, %s203
      %s205 = sphi 0, %s203
      %s206 = sphi 0, %s205
      %s220 = sphi 0, %s206
      %s226 = sphi 0, %s228
      %s229 = sphi 0, %s226
      %s230 = sphi 0, %s229
      %s246 = sphi 0, %s230
    $region4: #{tpu_custom_call.1} parent=1 // loop_header_branch
      %25 = sbr.rel (%p23) target = $region8
    $region5: #{tpu_custom_call.1} parent=1 // loop_body
      %s27 = ssub.s32 %s22, 1
      %s28 = ssub.s32 %s22, 2
      %s29 = sadd.s32 %s22, 1
      %s30 = ssub.s32 %s22, %s29
      %p31 = scmp.eq.s32.totalorder %s30, 0
      %s33 = sadd.s32 %s32, 1
      %s34 = scalar_select %p31, %s32, %s33
      %p37 = pneg %p31
      %p38 = scmp.eq.s32.totalorder %s22, 1
      %p39 = por %p37, %p38
      %p40 = scmp.ne.s32.totalorder %s32, %s35
      %p41 = scmp.eq.s32.totalorder %s22, 0
      %p42 = por %p40, %p41
      %p43 = scmp.ne.s32.totalorder %s32, %s35
      %p44 = scmp.eq.s32.totalorder %s27, 1
      %p45 = por %p43, %p44
      %p46 = scmp.ne.s32.totalorder %s35, %s36
      %p47 = scmp.eq.s32.totalorder %s27, 0
      %p48 = por %p46, %p47
      %p49 = scmp.ne.s32.totalorder %s35, %s36
      %p50 = scmp.eq.s32.totalorder %s28, 1
      %p51 = por %p49, %p50
      %p53 = scmp.ne.s32.totalorder %s36, %s52
      %p54 = scmp.eq.s32.totalorder %s28, 0
      %p55 = por %p53, %p54
      %s57 = sadd.s32 %s56, 1
      %p60 = scmp.eq.s32.totalorder %s22, 1
      %p61 = scmp.ne.s32.totalorder %s56, %s58
      %p62 = scmp.eq.s32.totalorder %s22, 0
      %p63 = por %p61, %p62
      %p64 = scmp.ne.s32.totalorder %s56, %s58
      %p65 = scmp.eq.s32.totalorder %s27, 1
      %p66 = por %p64, %p65
      %p67 = scmp.ne.s32.totalorder %s58, %s59
      %p68 = scmp.eq.s32.totalorder %s27, 0
      %p69 = por %p67, %p68
      %p70 = scmp.ne.s32.totalorder %s58, %s59
      %p71 = scmp.eq.s32.totalorder %s28, 1
      %p72 = por %p70, %p71
      %p74 = scmp.ne.s32.totalorder %s59, %s73
      %p75 = scmp.eq.s32.totalorder %s28, 0
      %p76 = por %p74, %p75
      %s78 = sadd.s32 %s77, 1
      %p81 = scmp.eq.s32.totalorder %s22, 1
      %p82 = scmp.ne.s32.totalorder %s77, %s79
      %p83 = scmp.eq.s32.totalorder %s22, 0
      %p84 = por %p82, %p83
      %p85 = scmp.ne.s32.totalorder %s77, %s79
      %p86 = scmp.eq.s32.totalorder %s27, 1
      %p87 = por %p85, %p86
      %p88 = scmp.ne.s32.totalorder %s79, %s80
      %p89 = scmp.eq.s32.totalorder %s27, 0
      %p90 = por %p88, %p89
      %p91 = scmp.ne.s32.totalorder %s79, %s80
      %p92 = scmp.eq.s32.totalorder %s28, 1
      %p93 = por %p91, %p92
      %p95 = scmp.ne.s32.totalorder %s80, %s94
      %p96 = scmp.eq.s32.totalorder %s28, 0
      %p97 = por %p95, %p96
      %s99 = sadd.s32 %s98, 1
      %p102 = scmp.eq.s32.totalorder %s22, 1
      %p103 = scmp.ne.s32.totalorder %s98, %s100
      %p104 = scmp.eq.s32.totalorder %s22, 0
      %p105 = por %p103, %p104
      %p106 = scmp.ne.s32.totalorder %s98, %s100
      %p107 = scmp.eq.s32.totalorder %s27, 1
      %p108 = por %p106, %p107
      %p109 = scmp.ne.s32.totalorder %s100, %s101
      %p110 = scmp.eq.s32.totalorder %s27, 0
      %p111 = por %p109, %p110
      %p112 = scmp.ne.s32.totalorder %s100, %s101
      %p113 = scmp.eq.s32.totalorder %s28, 1
      %p114 = por %p112, %p113
      %p116 = scmp.ne.s32.totalorder %s101, %s115
      %p117 = scmp.eq.s32.totalorder %s28, 0
      %p118 = por %p116, %p117
      %s120 = sadd.s32 %s119, 1
      %p123 = scmp.eq.s32.totalorder %s22, 1
      %p124 = scmp.ne.s32.totalorder %s119, %s121
      %p125 = scmp.eq.s32.totalorder %s22, 0
      %p126 = por %p124, %p125
      %p127 = scmp.ne.s32.totalorder %s119, %s121
      %p128 = scmp.eq.s32.totalorder %s27, 1
      %p129 = por %p127, %p128
      %p130 = scmp.ne.s32.totalorder %s121, %s122
      %p131 = scmp.eq.s32.totalorder %s27, 0
      %p132 = por %p130, %p131
      %p133 = scmp.ne.s32.totalorder %s121, %s122
      %p134 = scmp.eq.s32.totalorder %s28, 1
      %p135 = por %p133, %p134
      %p137 = scmp.ne.s32.totalorder %s122, %s136
      %p138 = scmp.eq.s32.totalorder %s28, 0
      %p139 = por %p137, %p138
      %s141 = sadd.s32 %s140, 1
      %p144 = scmp.eq.s32.totalorder %s22, 1
      %p145 = scmp.ne.s32.totalorder %s140, %s142
      %p146 = scmp.eq.s32.totalorder %s22, 0
      %p147 = por %p145, %p146
      %p148 = scmp.ne.s32.totalorder %s140, %s142
      %p149 = scmp.eq.s32.totalorder %s27, 1
      %p150 = por %p148, %p149
      %p151 = scmp.ne.s32.totalorder %s142, %s143
      %p152 = scmp.eq.s32.totalorder %s27, 0
      %p153 = por %p151, %p152
      %p154 = scmp.ne.s32.totalorder %s142, %s143
      %p155 = scmp.eq.s32.totalorder %s28, 1
      %p156 = por %p154, %p155
      %p158 = scmp.ne.s32.totalorder %s143, %s157
      %p159 = scmp.eq.s32.totalorder %s28, 0
      %p160 = por %p158, %p159
      %s162 = sadd.s32 %s161, 1
      %p165 = scmp.eq.s32.totalorder %s22, 1
      %p166 = scmp.ne.s32.totalorder %s161, %s163
      %p167 = scmp.eq.s32.totalorder %s22, 0
      %p168 = por %p166, %p167
      %p169 = scmp.ne.s32.totalorder %s161, %s163
      %p170 = scmp.eq.s32.totalorder %s27, 1
      %p171 = por %p169, %p170
      %p172 = scmp.ne.s32.totalorder %s163, %s164
      %p173 = scmp.eq.s32.totalorder %s27, 0
      %p174 = por %p172, %p173
      %p175 = scmp.ne.s32.totalorder %s163, %s164
      %p176 = scmp.eq.s32.totalorder %s28, 1
      %p177 = por %p175, %p176
      %p179 = scmp.ne.s32.totalorder %s164, %s178
      %p180 = scmp.eq.s32.totalorder %s28, 0
      %p181 = por %p179, %p180
      %s183 = sadd.s32 %s182, 1
      %p186 = scmp.eq.s32.totalorder %s22, 1
      %p187 = scmp.ne.s32.totalorder %s182, %s184
      %p188 = scmp.eq.s32.totalorder %s22, 0
      %p189 = por %p187, %p188
      %p190 = scmp.ne.s32.totalorder %s182, %s184
      %p191 = scmp.eq.s32.totalorder %s27, 1
      %p192 = por %p190, %p191
      %p193 = scmp.ne.s32.totalorder %s184, %s185
      %p194 = scmp.eq.s32.totalorder %s27, 0
      %p195 = por %p193, %p194
      %p196 = scmp.ne.s32.totalorder %s184, %s185
      %p197 = scmp.eq.s32.totalorder %s28, 1
      %p198 = por %p196, %p197
      %p200 = scmp.ne.s32.totalorder %s185, %s199
      %p201 = scmp.eq.s32.totalorder %s28, 0
      %p202 = por %p200, %p201
      %s204 = sadd.s32 %s203, 1
      %p207 = scmp.eq.s32.totalorder %s22, 1
      %p208 = scmp.ne.s32.totalorder %s203, %s205
      %p209 = scmp.eq.s32.totalorder %s22, 0
      %p210 = por %p208, %p209
      %p211 = scmp.ne.s32.totalorder %s203, %s205
      %p212 = scmp.eq.s32.totalorder %s27, 1
      %p213 = por %p211, %p212
      %p214 = scmp.ne.s32.totalorder %s205, %s206
      %p215 = scmp.eq.s32.totalorder %s27, 0
      %p216 = por %p214, %p215
      %p217 = scmp.ne.s32.totalorder %s205, %s206
      %p218 = scmp.eq.s32.totalorder %s28, 1
      %p219 = por %p217, %p218
      %p221 = scmp.ne.s32.totalorder %s206, %s220
      %p222 = scmp.eq.s32.totalorder %s28, 0
      %p223 = por %p221, %p222
      %s224 = ssub.s32 %s22, %s29
      %p225 = scmp.eq.s32.totalorder %s224, 0
      %s227 = sadd.s32 %s226, 1
      %s228 = scalar_select %p225, %s226, %s227
      %p231 = pneg %p225
      %p232 = scmp.eq.s32.totalorder %s22, 1
      %p233 = por %p231, %p232
      %p234 = scmp.ne.s32.totalorder %s226, %s229
      %p235 = scmp.eq.s32.totalorder %s22, 0
      %p236 = por %p234, %p235
      %p237 = scmp.ne.s32.totalorder %s226, %s229
      %p238 = scmp.eq.s32.totalorder %s27, 1
      %p239 = por %p237, %p238
      %p240 = scmp.ne.s32.totalorder %s229, %s230
      %p241 = scmp.eq.s32.totalorder %s27, 0
      %p242 = por %p240, %p241
      %p243 = scmp.ne.s32.totalorder %s229, %s230
      %p244 = scmp.eq.s32.totalorder %s28, 1
      %p245 = por %p243, %p244
      %p247 = scmp.ne.s32.totalorder %s230, %s246
      %p248 = scmp.eq.s32.totalorder %s28, 0
      %p249 = por %p247, %p248
      %p250 = scmp.le.s32.totalorder 1, %s22
      %p251 = scmp.lt.s32.totalorder %s22, 3
      %p252 = pnand %p250, %p251
      %p253 = pneg %p252
      // Predicated region
      $region9: #{tpu_custom_call.1} parent=5 // pred_check
        _
      $region10: #{tpu_custom_call.1} parent=5 // pred_check_branch
        %255 = sbr.rel (%p252) target = $region12
      $region11: #{tpu_custom_call.1} parent=5 // pred_region
        %s256 = ssub.s32 %s22, 1
        // Predicated region
        $region13: #{tpu_custom_call.1} parent=11 // pred_check
          %p257 = pneg %p69
        $region14: #{tpu_custom_call.1} parent=11 // pred_check_branch
          %259 = sbr.rel (%p257) target = $region16
        $region15: #{tpu_custom_call.1} parent=11 // pred_region
          %s261 = ssub.s32 6144, 6144
          %262 = vsyncadd [#allocation6], %s261
          %s263 = sshll.u32 [#allocation5], 4
          %s264 = int_to_ptr.vmem [resolvable:$true] %s263
          %269 = dma.hbm_to_vmem [thread:$0]  %s1, 6144, %s264, [#allocation6], 128, 128, 8
        $region16: #{tpu_custom_call.1} parent=11 // pred_fallthru
          _
        // Predicated region
        $region17: #{tpu_custom_call.1} parent=11 // pred_check
          %p270 = pneg %p90
        $region18: #{tpu_custom_call.1} parent=11 // pred_check_branch
          %272 = sbr.rel (%p270) target = $region20
        $region19: #{tpu_custom_call.1} parent=11 // pred_region
          %s274 = ssub.s32 3072, 3072
          %275 = vsyncadd [#allocation6], %s274
          %s276 = sshll.u32 [#allocation7], 4
          %s277 = int_to_ptr.vmem [resolvable:$true] %s276
          %282 = dma.hbm_to_vmem [thread:$0]  %s2, 3072, %s277, [#allocation6], 64, 64, 4
        $region20: #{tpu_custom_call.1} parent=11 // pred_fallthru
          _
        // Predicated region
        $region21: #{tpu_custom_call.1} parent=11 // pred_check
          %p283 = pneg %p111
        $region22: #{tpu_custom_call.1} parent=11 // pred_check_branch
          %285 = sbr.rel (%p283) target = $region24
        $region23: #{tpu_custom_call.1} parent=11 // pred_region
          _
        $region24: #{tpu_custom_call.1} parent=11 // pred_fallthru
          _
        // Predicated region
        $region25: #{tpu_custom_call.1} parent=11 // pred_check
          %p286 = pneg %p132
        $region26: #{tpu_custom_call.1} parent=11 // pred_check_branch
          %288 = sbr.rel (%p286) target = $region28
        $region27: #{tpu_custom_call.1} parent=11 // pred_region
          _
        $region28: #{tpu_custom_call.1} parent=11 // pred_fallthru
          _
        // Predicated region
        $region29: #{tpu_custom_call.1} parent=11 // pred_check
          %p289 = pneg %p153
        $region30: #{tpu_custom_call.1} parent=11 // pred_check_branch
          %291 = sbr.rel (%p289) target = $region32
        $region31: #{tpu_custom_call.1} parent=11 // pred_region
          _
        $region32: #{tpu_custom_call.1} parent=11 // pred_fallthru
          _
        // Predicated region
        $region33: #{tpu_custom_call.1} parent=11 // pred_check
          %p292 = pneg %p174
        $region34: #{tpu_custom_call.1} parent=11 // pred_check_branch
          %294 = sbr.rel (%p292) target = $region36
        $region35: #{tpu_custom_call.1} parent=11 // pred_region
          _
        $region36: #{tpu_custom_call.1} parent=11 // pred_fallthru
          _
        // Predicated region
        $region37: #{tpu_custom_call.1} parent=11 // pred_check
          %p295 = pneg %p195
        $region38: #{tpu_custom_call.1} parent=11 // pred_check_branch
          %297 = sbr.rel (%p295) target = $region40
        $region39: #{tpu_custom_call.1} parent=11 // pred_region
          _
        $region40: #{tpu_custom_call.1} parent=11 // pred_fallthru
          _
        // Predicated region
        $region41: #{tpu_custom_call.1} parent=11 // pred_check
          %p298 = pneg %p216
        $region42: #{tpu_custom_call.1} parent=11 // pred_check_branch
          %300 = sbr.rel (%p298) target = $region44
        $region43: #{tpu_custom_call.1} parent=11 // pred_region
          _
        $region44: #{tpu_custom_call.1} parent=11 // pred_fallthru
          _
      $region12: #{tpu_custom_call.1} parent=5 // pred_fallthru
        _
      %p301 = scmp.lt.s32.totalorder %s22, 2
      // Predicated region
      $region45: #{tpu_custom_call.1} parent=5 // pred_check
        %p302 = pneg %p301
      $region46: #{tpu_custom_call.1} parent=5 // pred_check_branch
        %304 = sbr.rel (%p302) target = $region48
      $region47: #{tpu_custom_call.1} parent=5 // pred_region
        // Predicated region
        $region49: #{tpu_custom_call.1} parent=47 // pred_check
          %p305 = pneg %p42
        $region50: #{tpu_custom_call.1} parent=47 // pred_check_branch
          %307 = sbr.rel (%p305) target = $region52
        $region51: #{tpu_custom_call.1} parent=47 // pred_region
          %s308 = sand.u32 %s32, 1
          %s309 = scalar_lea.sflag [#allocation3], %s308
          %s310 = sand.u32 %s32, 1
          %s311 = smul.addr %s310, 32
          %s312 = scalar_lea.vmem [#allocation2], %s311
          %s313 = smul.u32 2, %s22
          %s315 = ssub.s32 512, 512
          %316 = vsyncadd %s309, %s315
          %s317 = smul.addr %s313, 2
          %s318 = smul.addr %s317, 128
          %s319 = scalar_lea.hbm %s0, %s318
          %s320 = sshll.u32 %s312, 4
          %s321 = int_to_ptr.vmem [resolvable:$true] %s320
          %326 = dma.hbm_to_vmem [thread:$0]  %s319, 512, %s321, %s309, 128, 128, 8
        $region52: #{tpu_custom_call.1} parent=47 // pred_fallthru
          _
      $region48: #{tpu_custom_call.1} parent=5 // pred_fallthru
        _
      %p327 = scmp.le.s32.totalorder 1, %s22
      %p328 = scmp.lt.s32.totalorder %s22, 3
      %p329 = pnand %p327, %p328
      %p330 = pneg %p329
      // Predicated region
      $region53: #{tpu_custom_call.1} parent=5 // pred_check
        _
      $region54: #{tpu_custom_call.1} parent=5 // pred_check_branch
        %332 = sbr.rel (%p329) target = $region56
      $region55: #{tpu_custom_call.1} parent=5 // pred_region
        %s333 = ssub.s32 %s22, 1
        %s334 = sand.u32 %s35, 1
        %s335 = scalar_lea.sflag [#allocation3], %s334
        %s336 = sand.u32 %s35, 1
        %s337 = smul.addr %s336, 32
        %s338 = scalar_lea.vmem [#allocation2], %s337
        // Predicated region
        $region57: #{tpu_custom_call.1} parent=55 // pred_check
          %p339 = pneg %p48
        $region58: #{tpu_custom_call.1} parent=55 // pred_check_branch
          %341 = sbr.rel (%p339) target = $region60
        $region59: #{tpu_custom_call.1} parent=55 // pred_region
          %342 = dma.done %s335, 512
        $region60: #{tpu_custom_call.1} parent=55 // pred_fallthru
          _
        // Predicated region
        $region61: #{tpu_custom_call.1} parent=55 // pred_check
          %p343 = pneg %p69
        $region62: #{tpu_custom_call.1} parent=55 // pred_check_branch
          %345 = sbr.rel (%p343) target = $region64
        $region63: #{tpu_custom_call.1} parent=55 // pred_region
          %346 = dma.done [#allocation6], 6144
        $region64: #{tpu_custom_call.1} parent=55 // pred_fallthru
          _
        // Predicated region
        $region65: #{tpu_custom_call.1} parent=55 // pred_check
          %p347 = pneg %p90
        $region66: #{tpu_custom_call.1} parent=55 // pred_check_branch
          %349 = sbr.rel (%p347) target = $region68
        $region67: #{tpu_custom_call.1} parent=55 // pred_region
          %350 = dma.done [#allocation6], 3072
        $region68: #{tpu_custom_call.1} parent=55 // pred_fallthru
          _
        %s351 = sand.u32 %s35, 1
        %s352 = scalar_lea.sflag [#allocation3], %s351
        %s353 = sand.u32 %s35, 1
        %s354 = smul.addr %s353, 32
        %s355 = scalar_lea.vmem [#allocation2], %s354
        %p356 = pneg %p48
        %p357 = pneg %p45
        %p358 = pneg %p69
        %p359 = pneg %p66
        %p360 = pneg %p90
        %p361 = pneg %p87
        %p362 = pneg %p111
        %p363 = pneg %p108
        %p364 = pneg %p132
        %p365 = pneg %p129
        %p366 = pneg %p153
        %p367 = pneg %p150
        %p368 = pneg %p174
        %p369 = pneg %p171
        %p370 = pneg %p195
        %p371 = pneg %p192
        %p372 = pneg %p216
        %p373 = pneg %p213
        %p374 = pneg %p242
        %p375 = pneg %p239
        %s376 = sand.u32 %s229, 1
        %s377 = scalar_lea.sflag [#allocation4], %s376
        %s378 = sand.u32 %s229, 1
        %s379 = smul.addr %s378, 32
        %s380 = scalar_lea.vmem [#allocation8], %s379
        %s381 = smul.u32 2, %s27
        %s382 = smul.u32 2, %s27
        %v384 = vld [vmem:[%s338] sm:$0xff]
        %v385 = vld [vmem:[%s338 + $0x8] sm:$0xff]
        %v386 = vld [vmem:[%s338 + $0x10] sm:$0xff]
        %v387 = vld [vmem:[%s338 + $0x18] sm:$0xff]
        %v388 = vpack.c.bf16 %v385, %v384
        %v389 = vpack.c.bf16 %v387, %v386
        %v391 = vshrl.u32 %v388, 16
        %v393 = vrot.slane %v391, 7
        %v394 = vshll.u32 %v388, 16
        %v396 = vor.u32 %v393, %v394
        %v398 = vshrl.u32 %v389, 16
        %v400 = vrot.slane %v398, 7
        %v401 = vshll.u32 %v389, 16
        %v403 = vor.u32 %v400, %v401
        %vm406 = vcmask 1040384
        %vm407 = vsmask.f32 256
        %vm408 = vmand %vm406, %vm407
        %v409 = vsel %vm408, 0, %v396
        %v410 = vsel %vm408, 0, %v403
        %v411 = vrot.slane %v394, 1
        %v412 = vor.u32 %v391, %v411
        %v413 = vrot.slane %v401, 1
        %v414 = vor.u32 %v398, %v413
        %vm417 = vcmask 1047552
        %vm418 = vsmask.f32 7424
        %vm419 = vmand %vm417, %vm418
        %v420 = vsel %vm419, %v412, 0
        %v421 = vsel %vm419, %v414, 0
        %v422 = vld [vmem:[#allocation5] sm:$0xff]
        %v423 = vld [vmem:[#allocation5 + $0x8] sm:$0xff]
        %v424 = vld [vmem:[#allocation5 + $0x10] sm:$0xff]
        %v425 = vld [vmem:[#allocation5 + $0x18] sm:$0xff]
        %v426 = vld [vmem:[#allocation5 + $0x20] sm:$0xff]
        %v427 = vld [vmem:[#allocation5 + $0x28] sm:$0xff]
        %v428 = vld [vmem:[#allocation5 + $0x30] sm:$0xff]
        %v429 = vld [vmem:[#allocation5 + $0x38] sm:$0xff]
        %v430 = vld [vmem:[#allocation5 + $0x40] sm:$0xff]
        %v431 = vld [vmem:[#allocation5 + $0x48] sm:$0xff]
        %v432 = vld [vmem:[#allocation5 + $0x50] sm:$0xff]
        %v433 = vld [vmem:[#allocation5 + $0x58] sm:$0xff]
        %v434 = vld [vmem:[#allocation5 + $0x60] sm:$0xff]
        %v435 = vld [vmem:[#allocation5 + $0x68] sm:$0xff]
        %v436 = vld [vmem:[#allocation5 + $0x70] sm:$0xff]
        %v437 = vld [vmem:[#allocation5 + $0x78] sm:$0xff]
        %v438 = vld [vmem:[#allocation5 + $0x80] sm:$0xff]
        %v439 = vld [vmem:[#allocation5 + $0x88] sm:$0xff]
        %v440 = vld [vmem:[#allocation5 + $0x90] sm:$0xff]
        %v441 = vld [vmem:[#allocation5 + $0x98] sm:$0xff]
        %v442 = vld [vmem:[#allocation5 + $0xa0] sm:$0xff]
        %v443 = vld [vmem:[#allocation5 + $0xa8] sm:$0xff]
        %v444 = vld [vmem:[#allocation5 + $0xb0] sm:$0xff]
        %v445 = vld [vmem:[#allocation5 + $0xb8] sm:$0xff]
        %v446 = vld [vmem:[#allocation5 + $0xc0] sm:$0xff]
        %v447 = vld [vmem:[#allocation5 + $0xc8] sm:$0xff]
        %v448 = vld [vmem:[#allocation5 + $0xd0] sm:$0xff]
        %v449 = vld [vmem:[#allocation5 + $0xd8] sm:$0xff]
        %v450 = vld [vmem:[#allocation5 + $0xe0] sm:$0xff]
        %v451 = vld [vmem:[#allocation5 + $0xe8] sm:$0xff]
        %v452 = vld [vmem:[#allocation5 + $0xf0] sm:$0xff]
        %v453 = vld [vmem:[#allocation5 + $0xf8] sm:$0xff]
        %v454 = vld [vmem:[#allocation5 + $0x100] sm:$0xff]
        %v455 = vld [vmem:[#allocation5 + $0x108] sm:$0xff]
        %v456 = vld [vmem:[#allocation5 + $0x110] sm:$0xff]
        %v457 = vld [vmem:[#allocation5 + $0x118] sm:$0xff]
        %v458 = vld [vmem:[#allocation5 + $0x120] sm:$0xff]
        %v459 = vld [vmem:[#allocation5 + $0x128] sm:$0xff]
        %v460 = vld [vmem:[#allocation5 + $0x130] sm:$0xff]
        %v461 = vld [vmem:[#allocation5 + $0x138] sm:$0xff]
        %v462 = vld [vmem:[#allocation5 + $0x140] sm:$0xff]
        %v463 = vld [vmem:[#allocation5 + $0x148] sm:$0xff]
        %v464 = vld [vmem:[#allocation5 + $0x150] sm:$0xff]
        %v465 = vld [vmem:[#allocation5 + $0x158] sm:$0xff]
        %v466 = vld [vmem:[#allocation5 + $0x160] sm:$0xff]
        %v467 = vld [vmem:[#allocation5 + $0x168] sm:$0xff]
        %v468 = vld [vmem:[#allocation5 + $0x170] sm:$0xff]
        %v469 = vld [vmem:[#allocation5 + $0x178] sm:$0xff]
        %v518 = vunpack.c.l.b16 %v422
        %v519 = vunpack.c.h.b16 %v422
        %v520 = vunpack.c.l.b16 %v423
        %v521 = vunpack.c.h.b16 %v423
        %v522 = vunpack.c.l.b16 %v424
        %v523 = vunpack.c.h.b16 %v424
        %v524 = vunpack.c.l.b16 %v425
        %v525 = vunpack.c.h.b16 %v425
        %v526 = vunpack.c.l.b16 %v426
        %v527 = vunpack.c.h.b16 %v426
        %v528 = vunpack.c.l.b16 %v427
        %v529 = vunpack.c.h.b16 %v427
        %v530 = vunpack.c.l.b16 %v428
        %v531 = vunpack.c.h.b16 %v428
        %v532 = vunpack.c.l.b16 %v429
        %v533 = vunpack.c.h.b16 %v429
        %v534 = vunpack.c.l.b16 %v430
        %v535 = vunpack.c.h.b16 %v430
        %v536 = vunpack.c.l.b16 %v431
        %v537 = vunpack.c.h.b16 %v431
        %v538 = vunpack.c.l.b16 %v432
        %v539 = vunpack.c.h.b16 %v432
        %v540 = vunpack.c.l.b16 %v433
        %v541 = vunpack.c.h.b16 %v433
        %v542 = vunpack.c.l.b16 %v434
        %v543 = vunpack.c.h.b16 %v434
        %v544 = vunpack.c.l.b16 %v435
        %v545 = vunpack.c.h.b16 %v435
        %v546 = vunpack.c.l.b16 %v436
        %v547 = vunpack.c.h.b16 %v436
        %v548 = vunpack.c.l.b16 %v437
        %v549 = vunpack.c.h.b16 %v437
        %v550 = vunpack.c.l.b16 %v438
        %v551 = vunpack.c.h.b16 %v438
        %v552 = vunpack.c.l.b16 %v439
        %v553 = vunpack.c.h.b16 %v439
        %v554 = vunpack.c.l.b16 %v440
        %v555 = vunpack.c.h.b16 %v440
        %v556 = vunpack.c.l.b16 %v441
        %v557 = vunpack.c.h.b16 %v441
        %v558 = vunpack.c.l.b16 %v442
        %v559 = vunpack.c.h.b16 %v442
        %v560 = vunpack.c.l.b16 %v443
        %v561 = vunpack.c.h.b16 %v443
        %v562 = vunpack.c.l.b16 %v444
        %v563 = vunpack.c.h.b16 %v444
        %v564 = vunpack.c.l.b16 %v445
        %v565 = vunpack.c.h.b16 %v445
        %v566 = vunpack.c.l.b16 %v446
        %v567 = vunpack.c.h.b16 %v446
        %v568 = vunpack.c.l.b16 %v447
        %v569 = vunpack.c.h.b16 %v447
        %v570 = vunpack.c.l.b16 %v448
        %v571 = vunpack.c.h.b16 %v448
        %v572 = vunpack.c.l.b16 %v449
        %v573 = vunpack.c.h.b16 %v449
        %v574 = vunpack.c.l.b16 %v450
        %v575 = vunpack.c.h.b16 %v450
        %v576 = vunpack.c.l.b16 %v451
        %v577 = vunpack.c.h.b16 %v451
        %v578 = vunpack.c.l.b16 %v452
        %v579 = vunpack.c.h.b16 %v452
        %v580 = vunpack.c.l.b16 %v453
        %v581 = vunpack.c.h.b16 %v453
        %v582 = vunpack.c.l.b16 %v454
        %v583 = vunpack.c.h.b16 %v454
        %v584 = vunpack.c.l.b16 %v455
        %v585 = vunpack.c.h.b16 %v455
        %v586 = vunpack.c.l.b16 %v456
        %v587 = vunpack.c.h.b16 %v456
        %v588 = vunpack.c.l.b16 %v457
        %v589 = vunpack.c.h.b16 %v457
        %v590 = vunpack.c.l.b16 %v458
        %v591 = vunpack.c.h.b16 %v458
        %v592 = vunpack.c.l.b16 %v459
        %v593 = vunpack.c.h.b16 %v459
        %v594 = vunpack.c.l.b16 %v460
        %v595 = vunpack.c.h.b16 %v460
        %v596 = vunpack.c.l.b16 %v461
        %v597 = vunpack.c.h.b16 %v461
        %v598 = vunpack.c.l.b16 %v462
        %v599 = vunpack.c.h.b16 %v462
        %v600 = vunpack.c.l.b16 %v463
        %v601 = vunpack.c.h.b16 %v463
        %v602 = vunpack.c.l.b16 %v464
        %v603 = vunpack.c.h.b16 %v464
        %v604 = vunpack.c.l.b16 %v465
        %v605 = vunpack.c.h.b16 %v465
        %v606 = vunpack.c.l.b16 %v466
        %v607 = vunpack.c.h.b16 %v466
        %v608 = vunpack.c.l.b16 %v467
        %v609 = vunpack.c.h.b16 %v467
        %v610 = vunpack.c.l.b16 %v468
        %v611 = vunpack.c.h.b16 %v468
        %v612 = vunpack.c.l.b16 %v469
        %v613 = vunpack.c.h.b16 %v469
        %v614 = vpack.c.b16 %v520, %v518
        %v615 = vpack.c.b16 %v521, %v519
        %v616 = vpack.c.b16 %v524, %v522
        %v617 = vpack.c.b16 %v525, %v523
        %v618 = vpack.c.b16 %v528, %v526
        %v619 = vpack.c.b16 %v529, %v527
        %v620 = vpack.c.b16 %v532, %v530
        %v621 = vpack.c.b16 %v533, %v531
        %v622 = vpack.c.b16 %v536, %v534
        %v623 = vpack.c.b16 %v537, %v535
        %v624 = vpack.c.b16 %v540, %v538
        %v625 = vpack.c.b16 %v541, %v539
        %v626 = vpack.c.b16 %v544, %v542
        %v627 = vpack.c.b16 %v545, %v543
        %v628 = vpack.c.b16 %v548, %v546
        %v629 = vpack.c.b16 %v549, %v547
        %v630 = vpack.c.b16 %v552, %v550
        %v631 = vpack.c.b16 %v553, %v551
        %v632 = vpack.c.b16 %v556, %v554
        %v633 = vpack.c.b16 %v557, %v555
        %v634 = vpack.c.b16 %v560, %v558
        %v635 = vpack.c.b16 %v561, %v559
        %v636 = vpack.c.b16 %v564, %v562
        %v637 = vpack.c.b16 %v565, %v563
        %v638 = vpack.c.b16 %v568, %v566
        %v639 = vpack.c.b16 %v569, %v567
        %v640 = vpack.c.b16 %v572, %v570
        %v641 = vpack.c.b16 %v573, %v571
        %v642 = vpack.c.b16 %v576, %v574
        %v643 = vpack.c.b16 %v577, %v575
        %v644 = vpack.c.b16 %v580, %v578
        %v645 = vpack.c.b16 %v581, %v579
        %v646 = vpack.c.b16 %v584, %v582
        %v647 = vpack.c.b16 %v585, %v583
        %v648 = vpack.c.b16 %v588, %v586
        %v649 = vpack.c.b16 %v589, %v587
        %v650 = vpack.c.b16 %v592, %v590
        %v651 = vpack.c.b16 %v593, %v591
        %v652 = vpack.c.b16 %v596, %v594
        %v653 = vpack.c.b16 %v597, %v595
        %v654 = vpack.c.b16 %v600, %v598
        %v655 = vpack.c.b16 %v601, %v599
        %v656 = vpack.c.b16 %v604, %v602
        %v657 = vpack.c.b16 %v605, %v603
        %v658 = vpack.c.b16 %v608, %v606
        %v659 = vpack.c.b16 %v609, %v607
        %v660 = vpack.c.b16 %v612, %v610
        %v661 = vpack.c.b16 %v613, %v611
        %710 = vmatprep.subr.bf16.mxu0 %v615
        %711 = vmatpush1.bf16.msra.mxu0 %v614
        %712 = vmatprep.subr.bf16.mxu0 %v617
        %713 = vmatpush1.bf16.msra.mxu0 %v616
        %714 = vmatprep.subr.bf16.mxu0 %v619
        %715 = vmatpush1.bf16.msra.mxu0 %v618
        %716 = vmatprep.subr.bf16.mxu0 %v621
        %717 = vmatpush1.bf16.msra.mxu0 %v620
        %718 = vmatprep.subr.bf16.mxu0 %v623
        %719 = vmatpush1.bf16.msra.mxu0 %v622
        %720 = vmatprep.subr.bf16.mxu0 %v625
        %721 = vmatpush1.bf16.msra.mxu0 %v624
        %722 = vmatprep.subr.bf16.mxu0 %v627
        %723 = vmatpush1.bf16.msra.mxu0 %v626
        %724 = vmatprep.subr.bf16.mxu0 %v629
        %725 = vmatpush1.bf16.msra.mxu0 %v628
        %726 = vmatprep.subr.bf16.mxu0 %v631
        %727 = vmatpush1.bf16.msra.mxu0 %v630
        %728 = vmatprep.subr.bf16.mxu0 %v633
        %729 = vmatpush1.bf16.msra.mxu0 %v632
        %730 = vmatprep.subr.bf16.mxu0 %v635
        %731 = vmatpush1.bf16.msra.mxu0 %v634
        %732 = vmatprep.subr.bf16.mxu0 %v637
        %733 = vmatpush1.bf16.msra.mxu0 %v636
        %734 = vmatprep.subr.bf16.mxu0 %v639
        %735 = vmatpush1.bf16.msra.mxu0 %v638
        %736 = vmatprep.subr.bf16.mxu0 %v641
        %737 = vmatpush1.bf16.msra.mxu0 %v640
        %738 = vmatprep.subr.bf16.mxu0 %v643
        %739 = vmatpush1.bf16.msra.mxu0 %v642
        %740 = vmatprep.subr.bf16.mxu0 %v645
        %741 = vmatpush1.bf16.msra.mxu0 %v644
        %742 = vmatprep.mubr.bf16.mxu0 %v388
        %743 = vmatmul.mubr.bf16.gmra.mrb[0].mxu0 %v409
        %v744 = vpop.f32.mrb[0].mxu0
        %v745 = vadd.f32 0.0, %v744
        %v746 = vpop.f32.mrb[0].mxu0
        %v747 = vadd.f32 0.0, %v746
        %v748 = vpop.f32.mrb[0].mxu0
        %v749 = vadd.f32 0.0, %v748
        %v750 = vpop.f32.mrb[0].mxu0
        %v751 = vadd.f32 0.0, %v750
        %752 = vmatprep.mubr.bf16.mxu0 %v389
        %753 = vmatmul.mubr.bf16.gmra.mrb[0].mxu0 %v410
        %v754 = vpop.f32.mrb[0].mxu0
        %v755 = vadd.f32 0.0, %v754
        %v756 = vpop.f32.mrb[0].mxu0
        %v757 = vadd.f32 0.0, %v756
        %v758 = vpop.f32.mrb[0].mxu0
        %v759 = vadd.f32 0.0, %v758
        %v760 = vpop.f32.mrb[0].mxu0
        %v761 = vadd.f32 0.0, %v760
        %762 = vdwg.mxu0
        %763 = vmatprep.subr.bf16.mxu0 %v647
        %764 = vmatpush1.bf16.msra.mxu0 %v646
        %765 = vmatprep.subr.bf16.mxu0 %v649
        %766 = vmatpush1.bf16.msra.mxu0 %v648
        %767 = vmatprep.subr.bf16.mxu0 %v651
        %768 = vmatpush1.bf16.msra.mxu0 %v650
        %769 = vmatprep.subr.bf16.mxu0 %v653
        %770 = vmatpush1.bf16.msra.mxu0 %v652
        %771 = vmatprep.subr.bf16.mxu0 %v655
        %772 = vmatpush1.bf16.msra.mxu0 %v654
        %773 = vmatprep.subr.bf16.mxu0 %v657
        %774 = vmatpush1.bf16.msra.mxu0 %v656
        %775 = vmatprep.subr.bf16.mxu0 %v659
        %776 = vmatpush1.bf16.msra.mxu0 %v658
        %777 = vmatprep.subr.bf16.mxu0 %v661
        %778 = vmatpush1.bf16.msra.mxu0 %v660
        %779 = vmatprep.subr.bf16.mxu0 0
        %780 = vmatpush1.bf16.msra.mxu0 0
        %781 = vmatprep.subr.bf16.mxu0 0
        %782 = vmatpush1.bf16.msra.mxu0 0
        %783 = vmatprep.subr.bf16.mxu0 0
        %784 = vmatpush1.bf16.msra.mxu0 0
        %785 = vmatprep.subr.bf16.mxu0 0
        %786 = vmatpush1.bf16.msra.mxu0 0
        %787 = vmatprep.subr.bf16.mxu0 0
        %788 = vmatpush1.bf16.msra.mxu0 0
        %789 = vmatprep.subr.bf16.mxu0 0
        %790 = vmatpush1.bf16.msra.mxu0 0
        %791 = vmatprep.subr.bf16.mxu0 0
        %792 = vmatpush1.bf16.msra.mxu0 0
        %793 = vmatprep.subr.bf16.mxu0 0
        %794 = vmatpush1.bf16.msra.mxu0 0
        %795 = vmatprep.mubr.bf16.mxu0 0
        %796 = vmatmul.mubr.bf16.gmra.mrb[0].mxu0 %v420
        %v797 = vpop.f32.mrb[0].mxu0
        %v798 = vadd.f32 %v745, %v797
        %v799 = vpop.f32.mrb[0].mxu0
        %v800 = vadd.f32 %v747, %v799
        %v801 = vpop.f32.mrb[0].mxu0
        %v802 = vadd.f32 %v749, %v801
        %v803 = vpop.f32.mrb[0].mxu0
        %v804 = vadd.f32 %v751, %v803
        %805 = vmatprep.mubr.bf16.mxu0 0
        %806 = vmatmul.mubr.bf16.gmra.mrb[0].mxu0 %v421
        %v807 = vpop.f32.mrb[0].mxu0
        %v808 = vadd.f32 %v755, %v807
        %v809 = vpop.f32.mrb[0].mxu0
        %v810 = vadd.f32 %v757, %v809
        %v811 = vpop.f32.mrb[0].mxu0
        %v812 = vadd.f32 %v759, %v811
        %v813 = vpop.f32.mrb[0].mxu0
        %v814 = vadd.f32 %v761, %v813
        %815 = vdwg.mxu0
        %v816 = vld [vmem:[%s3] sm:$0x1]
        %v818 = vlaneseq
        %v819 = vshrl.u32 %v818, 7
        %v820 = vsub.s32 0, %v819
        %v821 = vrot.slane %v816, %v820
        %v823 = vmul.f32 %v798, %v821
        %v824 = vmul.f32 %v802, %v821
        %v825 = vmul.f32 %v808, %v821
        %v826 = vmul.f32 %v812, %v821
        %v827 = vld [vmem:[%s4] sm:$0x1]
        %v829 = vlaneseq
        %v830 = vshrl.u32 %v829, 7
        %v831 = vsub.s32 0, %v830
        %v832 = vrot.slane %v827, %v831
        %v834 = vadd.f32 %v823, %v832
        %v835 = vadd.f32 %v824, %v832
        %v836 = vadd.f32 %v825, %v832
        %v837 = vadd.f32 %v826, %v832
        %v838 = vmax.f32 %v834, 0.0
        %v839 = vmax.f32 %v835, 0.0
        %v840 = vmax.f32 %v836, 0.0
        %v841 = vmax.f32 %v837, 0.0
        %v842 = vpack.c.bf16 %v839, %v838
        %v843 = vpack.c.bf16 %v841, %v840
        %v845 = vshrl.u32 %v842, 16
        %v847 = vrot.slane %v845, 7
        %v848 = vshll.u32 %v842, 16
        %v850 = vor.u32 %v847, %v848
        %v852 = vshrl.u32 %v843, 16
        %v854 = vrot.slane %v852, 7
        %v855 = vshll.u32 %v843, 16
        %v857 = vor.u32 %v854, %v855
        %v860 = vsel %vm408, 0, %v850
        %v861 = vsel %vm408, 0, %v857
        %v862 = vrot.slane %v848, 1
        %v863 = vor.u32 %v845, %v862
        %v864 = vrot.slane %v855, 1
        %v865 = vor.u32 %v852, %v864
        %v868 = vsel %vm419, %v863, 0
        %v869 = vsel %vm419, %v865, 0
        %v870 = vld [vmem:[#allocation7] sm:$0xf]
        %v871 = vld [vmem:[#allocation7 + $0x4] sm:$0xf]
        %v872 = vld [vmem:[#allocation7 + $0x8] sm:$0xf]
        %v873 = vld [vmem:[#allocation7 + $0xc] sm:$0xf]
        %v874 = vld [vmem:[#allocation7 + $0x10] sm:$0xf]
        %v875 = vld [vmem:[#allocation7 + $0x14] sm:$0xf]
        %v876 = vld [vmem:[#allocation7 + $0x18] sm:$0xf]
        %v877 = vld [vmem:[#allocation7 + $0x1c] sm:$0xf]
        %v878 = vld [vmem:[#allocation7 + $0x20] sm:$0xf]
        %v879 = vld [vmem:[#allocation7 + $0x24] sm:$0xf]
        %v880 = vld [vmem:[#allocation7 + $0x28] sm:$0xf]
        %v881 = vld [vmem:[#allocation7 + $0x2c] sm:$0xf]
        %v882 = vld [vmem:[#allocation7 + $0x30] sm:$0xf]
        %v883 = vld [vmem:[#allocation7 + $0x34] sm:$0xf]
        %v884 = vld [vmem:[#allocation7 + $0x38] sm:$0xf]
        %v885 = vld [vmem:[#allocation7 + $0x3c] sm:$0xf]
        %v886 = vld [vmem:[#allocation7 + $0x40] sm:$0xf]
        %v887 = vld [vmem:[#allocation7 + $0x44] sm:$0xf]
        %v888 = vld [vmem:[#allocation7 + $0x48] sm:$0xf]
        %v889 = vld [vmem:[#allocation7 + $0x4c] sm:$0xf]
        %v890 = vld [vmem:[#allocation7 + $0x50] sm:$0xf]
        %v891 = vld [vmem:[#allocation7 + $0x54] sm:$0xf]
        %v892 = vld [vmem:[#allocation7 + $0x58] sm:$0xf]
        %v893 = vld [vmem:[#allocation7 + $0x5c] sm:$0xf]
        %v894 = vld [vmem:[#allocation7 + $0x60] sm:$0xf]
        %v895 = vld [vmem:[#allocation7 + $0x64] sm:$0xf]
        %v896 = vld [vmem:[#allocation7 + $0x68] sm:$0xf]
        %v897 = vld [vmem:[#allocation7 + $0x6c] sm:$0xf]
        %v898 = vld [vmem:[#allocation7 + $0x70] sm:$0xf]
        %v899 = vld [vmem:[#allocation7 + $0x74] sm:$0xf]
        %v900 = vld [vmem:[#allocation7 + $0x78] sm:$0xf]
        %v901 = vld [vmem:[#allocation7 + $0x7c] sm:$0xf]
        %v902 = vld [vmem:[#allocation7 + $0x80] sm:$0xf]
        %v903 = vld [vmem:[#allocation7 + $0x84] sm:$0xf]
        %v904 = vld [vmem:[#allocation7 + $0x88] sm:$0xf]
        %v905 = vld [vmem:[#allocation7 + $0x8c] sm:$0xf]
        %v906 = vld [vmem:[#allocation7 + $0x90] sm:$0xf]
        %v907 = vld [vmem:[#allocation7 + $0x94] sm:$0xf]
        %v908 = vld [vmem:[#allocation7 + $0x98] sm:$0xf]
        %v909 = vld [vmem:[#allocation7 + $0x9c] sm:$0xf]
        %v910 = vld [vmem:[#allocation7 + $0xa0] sm:$0xf]
        %v911 = vld [vmem:[#allocation7 + $0xa4] sm:$0xf]
        %v912 = vld [vmem:[#allocation7 + $0xa8] sm:$0xf]
        %v913 = vld [vmem:[#allocation7 + $0xac] sm:$0xf]
        %v914 = vld [vmem:[#allocation7 + $0xb0] sm:$0xf]
        %v915 = vld [vmem:[#allocation7 + $0xb4] sm:$0xf]
        %v916 = vld [vmem:[#allocation7 + $0xb8] sm:$0xf]
        %v917 = vld [vmem:[#allocation7 + $0xbc] sm:$0xf]
        %v966 = vunpack.c.l.b16 %v870
        %v967 = vunpack.c.l.b16 %v871
        %v968 = vunpack.c.l.b16 %v872
        %v969 = vunpack.c.l.b16 %v873
        %v970 = vunpack.c.l.b16 %v874
        %v971 = vunpack.c.l.b16 %v875
        %v972 = vunpack.c.l.b16 %v876
        %v973 = vunpack.c.l.b16 %v877
        %v974 = vunpack.c.l.b16 %v878
        %v975 = vunpack.c.l.b16 %v879
        %v976 = vunpack.c.l.b16 %v880
        %v977 = vunpack.c.l.b16 %v881
        %v978 = vunpack.c.l.b16 %v882
        %v979 = vunpack.c.l.b16 %v883
        %v980 = vunpack.c.l.b16 %v884
        %v981 = vunpack.c.l.b16 %v885
        %v982 = vunpack.c.l.b16 %v886
        %v983 = vunpack.c.l.b16 %v887
        %v984 = vunpack.c.l.b16 %v888
        %v985 = vunpack.c.l.b16 %v889
        %v986 = vunpack.c.l.b16 %v890
        %v987 = vunpack.c.l.b16 %v891
        %v988 = vunpack.c.l.b16 %v892
        %v989 = vunpack.c.l.b16 %v893
        %v990 = vunpack.c.l.b16 %v894
        %v991 = vunpack.c.l.b16 %v895
        %v992 = vunpack.c.l.b16 %v896
        %v993 = vunpack.c.l.b16 %v897
        %v994 = vunpack.c.l.b16 %v898
        %v995 = vunpack.c.l.b16 %v899
        %v996 = vunpack.c.l.b16 %v900
        %v997 = vunpack.c.l.b16 %v901
        %v998 = vunpack.c.l.b16 %v902
        %v999 = vunpack.c.l.b16 %v903
        %v1000 = vunpack.c.l.b16 %v904
        %v1001 = vunpack.c.l.b16 %v905
        %v1002 = vunpack.c.l.b16 %v906
        %v1003 = vunpack.c.l.b16 %v907
        %v1004 = vunpack.c.l.b16 %v908
        %v1005 = vunpack.c.l.b16 %v909
        %v1006 = vunpack.c.l.b16 %v910
        %v1007 = vunpack.c.l.b16 %v911
        %v1008 = vunpack.c.l.b16 %v912
        %v1009 = vunpack.c.l.b16 %v913
        %v1010 = vunpack.c.l.b16 %v914
        %v1011 = vunpack.c.l.b16 %v915
        %v1012 = vunpack.c.l.b16 %v916
        %v1013 = vunpack.c.l.b16 %v917
        %v1014 = vpack.c.b16 %v967, %v966
        %v1015 = vpack.c.b16 %v969, %v968
        %v1016 = vpack.c.b16 %v971, %v970
        %v1017 = vpack.c.b16 %v973, %v972
        %v1018 = vpack.c.b16 %v975, %v974
        %v1019 = vpack.c.b16 %v977, %v976
        %v1020 = vpack.c.b16 %v979, %v978
        %v1021 = vpack.c.b16 %v981, %v980
        %v1022 = vpack.c.b16 %v983, %v982
        %v1023 = vpack.c.b16 %v985, %v984
        %v1024 = vpack.c.b16 %v987, %v986
        %v1025 = vpack.c.b16 %v989, %v988
        %v1026 = vpack.c.b16 %v991, %v990
        %v1027 = vpack.c.b16 %v993, %v992
        %v1028 = vpack.c.b16 %v995, %v994
        %v1029 = vpack.c.b16 %v997, %v996
        %v1030 = vpack.c.b16 %v999, %v998
        %v1031 = vpack.c.b16 %v1001, %v1000
        %v1032 = vpack.c.b16 %v1003, %v1002
        %v1033 = vpack.c.b16 %v1005, %v1004
        %v1034 = vpack.c.b16 %v1007, %v1006
        %v1035 = vpack.c.b16 %v1009, %v1008
        %v1036 = vpack.c.b16 %v1011, %v1010
        %v1037 = vpack.c.b16 %v1013, %v1012
        %1062 = vmatprep.subr.bf16.mxu0 0
        %1063 = vmatpush1.bf16.msra.mxu0 %v1014
        %1064 = vmatprep.subr.bf16.mxu0 0
        %1065 = vmatpush1.bf16.msra.mxu0 %v1015
        %1066 = vmatprep.subr.bf16.mxu0 0
        %1067 = vmatpush1.bf16.msra.mxu0 %v1016
        %1068 = vmatprep.subr.bf16.mxu0 0
        %1069 = vmatpush1.bf16.msra.mxu0 %v1017
        %1070 = vmatprep.subr.bf16.mxu0 0
        %1071 = vmatpush1.bf16.msra.mxu0 %v1018
        %1072 = vmatprep.subr.bf16.mxu0 0
        %1073 = vmatpush1.bf16.msra.mxu0 %v1019
        %1074 = vmatprep.subr.bf16.mxu0 0
        %1075 = vmatpush1.bf16.msra.mxu0 %v1020
        %1076 = vmatprep.subr.bf16.mxu0 0
        %1077 = vmatpush1.bf16.msra.mxu0 %v1021
        %1078 = vmatprep.subr.bf16.mxu0 0
        %1079 = vmatpush1.bf16.msra.mxu0 %v1022
        %1080 = vmatprep.subr.bf16.mxu0 0
        %1081 = vmatpush1.bf16.msra.mxu0 %v1023
        %1082 = vmatprep.subr.bf16.mxu0 0
        %1083 = vmatpush1.bf16.msra.mxu0 %v1024
        %1084 = vmatprep.subr.bf16.mxu0 0
        %1085 = vmatpush1.bf16.msra.mxu0 %v1025
        %1086 = vmatprep.subr.bf16.mxu0 0
        %1087 = vmatpush1.bf16.msra.mxu0 %v1026
        %1088 = vmatprep.subr.bf16.mxu0 0
        %1089 = vmatpush1.bf16.msra.mxu0 %v1027
        %1090 = vmatprep.subr.bf16.mxu0 0
        %1091 = vmatpush1.bf16.msra.mxu0 %v1028
        %1092 = vmatprep.subr.bf16.mxu0 0
        %1093 = vmatpush1.bf16.msra.mxu0 %v1029
        %1094 = vmatprep.mubr.bf16.mxu0 %v842
        %1095 = vmatmul.mubr.bf16.gmra.mrb[0].mxu0 %v860
        %v1096 = vpop.f32.mrb[0].mxu0
        %v1097 = vadd.f32 0.0, %v1096
        %v1098 = vpop.f32.mrb[0].mxu0
        %v1099 = vpop.f32.mrb[0].mxu0
        %v1100 = vadd.f32 0.0, %v1099
        %v1101 = vpop.f32.mrb[0].mxu0
        %1102 = vmatprep.mubr.bf16.mxu0 %v843
        %1103 = vmatmul.mubr.bf16.gmra.mrb[0].mxu0 %v861
        %v1104 = vpop.f32.mrb[0].mxu0
        %v1105 = vadd.f32 0.0, %v1104
        %v1106 = vpop.f32.mrb[0].mxu0
        %v1107 = vpop.f32.mrb[0].mxu0
        %v1108 = vadd.f32 0.0, %v1107
        %v1109 = vpop.f32.mrb[0].mxu0
        %1110 = vdwg.mxu0
        %1111 = vmatprep.subr.bf16.mxu0 0
        %1112 = vmatpush1.bf16.msra.mxu0 %v1030
        %1113 = vmatprep.subr.bf16.mxu0 0
        %1114 = vmatpush1.bf16.msra.mxu0 %v1031
        %1115 = vmatprep.subr.bf16.mxu0 0
        %1116 = vmatpush1.bf16.msra.mxu0 %v1032
        %1117 = vmatprep.subr.bf16.mxu0 0
        %1118 = vmatpush1.bf16.msra.mxu0 %v1033
        %1119 = vmatprep.subr.bf16.mxu0 0
        %1120 = vmatpush1.bf16.msra.mxu0 %v1034
        %1121 = vmatprep.subr.bf16.mxu0 0
        %1122 = vmatpush1.bf16.msra.mxu0 %v1035
        %1123 = vmatprep.subr.bf16.mxu0 0
        %1124 = vmatpush1.bf16.msra.mxu0 %v1036
        %1125 = vmatprep.subr.bf16.mxu0 0
        %1126 = vmatpush1.bf16.msra.mxu0 %v1037
        %1127 = vmatprep.subr.bf16.mxu0 0
        %1128 = vmatpush1.bf16.msra.mxu0 0
        %1129 = vmatprep.subr.bf16.mxu0 0
        %1130 = vmatpush1.bf16.msra.mxu0 0
        %1131 = vmatprep.subr.bf16.mxu0 0
        %1132 = vmatpush1.bf16.msra.mxu0 0
        %1133 = vmatprep.subr.bf16.mxu0 0
        %1134 = vmatpush1.bf16.msra.mxu0 0
        %1135 = vmatprep.subr.bf16.mxu0 0
        %1136 = vmatpush1.bf16.msra.mxu0 0
        %1137 = vmatprep.subr.bf16.mxu0 0
        %1138 = vmatpush1.bf16.msra.mxu0 0
        %1139 = vmatprep.subr.bf16.mxu0 0
        %1140 = vmatpush1.bf16.msra.mxu0 0
        %1141 = vmatprep.subr.bf16.mxu0 0
        %1142 = vmatpush1.bf16.msra.mxu0 0
        %1143 = vmatprep.mubr.bf16.mxu0 0
        %1144 = vmatmul.mubr.bf16.gmra.mrb[0].mxu0 %v868
        %v1145 = vpop.f32.mrb[0].mxu0
        %v1146 = vadd.f32 %v1097, %v1145
        %v1147 = vpop.f32.mrb[0].mxu0
        %v1148 = vpop.f32.mrb[0].mxu0
        %v1149 = vadd.f32 %v1100, %v1148
        %v1150 = vpop.f32.mrb[0].mxu0
        %1151 = vmatprep.mubr.bf16.mxu0 0
        %1152 = vmatmul.mubr.bf16.gmra.mrb[0].mxu0 %v869
        %v1153 = vpop.f32.mrb[0].mxu0
        %v1154 = vadd.f32 %v1105, %v1153
        %v1155 = vpop.f32.mrb[0].mxu0
        %v1156 = vpop.f32.mrb[0].mxu0
        %v1157 = vadd.f32 %v1108, %v1156
        %v1158 = vpop.f32.mrb[0].mxu0
        %1159 = vdwg.mxu0
        %v1160 = vld [vmem:[%s5] sm:$0x1]
        %v1162 = vlaneseq
        %v1163 = vshrl.u32 %v1162, 7
        %v1164 = vsub.s32 0, %v1163
        %v1165 = vrot.slane %v1160, %v1164
        %v1167 = vmul.f32 %v1146, %v1165
        %v1168 = vmul.f32 %v1149, %v1165
        %v1169 = vmul.f32 %v1154, %v1165
        %v1170 = vmul.f32 %v1157, %v1165
        %v1171 = vld [vmem:[%s6] sm:$0x1]
        %v1173 = vlaneseq
        %v1174 = vshrl.u32 %v1173, 7
        %v1175 = vsub.s32 0, %v1174
        %v1176 = vrot.slane %v1171, %v1175
        %v1178 = vadd.f32 %v1167, %v1176
        %v1179 = vadd.f32 %v1168, %v1176
        %v1180 = vadd.f32 %v1169, %v1176
        %v1181 = vadd.f32 %v1170, %v1176
        %v1182 = vld [vmem:[%s7] sm:$0x1]
        %v1184 = vlaneseq
        %v1185 = vshrl.u32 %v1184, 7
        %v1186 = vsub.s32 0, %v1185
        %v1187 = vrot.slane %v1182, %v1186
        %v1189 = vmul.f32 %v800, %v1187
        %v1190 = vmul.f32 %v804, %v1187
        %v1191 = vmul.f32 %v810, %v1187
        %v1192 = vmul.f32 %v814, %v1187
        %v1193 = vld [vmem:[%s8] sm:$0x1]
        %v1195 = vlaneseq
        %v1196 = vshrl.u32 %v1195, 7
        %v1197 = vsub.s32 0, %v1196
        %v1198 = vrot.slane %v1193, %v1197
        %v1200 = vadd.f32 %v1189, %v1198
        %v1201 = vadd.f32 %v1190, %v1198
        %v1202 = vadd.f32 %v1191, %v1198
        %v1203 = vadd.f32 %v1192, %v1198
        %v1204 = vadd.f32 %v1178, %v1200
        %v1205 = vadd.f32 %v1179, %v1201
        %v1206 = vadd.f32 %v1180, %v1202
        %v1207 = vadd.f32 %v1181, %v1203
        %v1208 = vmax.f32 %v1204, 0.0
        %v1209 = vmax.f32 %v1205, 0.0
        %v1210 = vmax.f32 %v1206, 0.0
        %v1211 = vmax.f32 %v1207, 0.0
        %1212 = vst [vmem:[%s380] sm:$0xff] %v1208
        %1213 = vst [vmem:[%s380 + $0x8] sm:$0xff] %v1209
        %1214 = vst [vmem:[%s380 + $0x10] sm:$0xff] %v1210
        %1215 = vst [vmem:[%s380 + $0x18] sm:$0xff] %v1211
        %s1216 = sand.u32 %s229, 1
        %s1217 = scalar_lea.sflag [#allocation4], %s1216
        %s1218 = sand.u32 %s229, 1
        %s1219 = smul.addr %s1218, 32
        %s1220 = scalar_lea.vmem [#allocation8], %s1219
        // Predicated region
        $region69: #{tpu_custom_call.1} parent=55 // pred_check
          %p1221 = pneg %p239
        $region70: #{tpu_custom_call.1} parent=55 // pred_check_branch
          %1223 = sbr.rel (%p1221) target = $region72
        $region71: #{tpu_custom_call.1} parent=55 // pred_region
          %s1224 = smul.u32 2, %s27
          %s1226 = ssub.s32 512, 512
          %1227 = vsyncadd %s1217, %s1226
          %s1228 = smul.addr %s1224, 2
          %s1229 = smul.addr %s1228, 128
          %s1230 = scalar_lea.hbm %s9, %s1229
          %s1231 = sshll.u32 %s1220, 4
          %s1232 = int_to_ptr.vmem [resolvable:$true] %s1231
          %1237 = dma.vmem_to_hbm [thread:$0]  %s1232, 512, %s1230, %s1217, 128, 128, 8
        $region72: #{tpu_custom_call.1} parent=55 // pred_fallthru
          _
      $region56: #{tpu_custom_call.1} parent=5 // pred_fallthru
        _
      %p1238 = scmp.le.s32.totalorder 2, %s22
      // Predicated region
      $region73: #{tpu_custom_call.1} parent=5 // pred_check
        %p1239 = pneg %p1238
      $region74: #{tpu_custom_call.1} parent=5 // pred_check_branch
        %1241 = sbr.rel (%p1239) target = $region76
      $region75: #{tpu_custom_call.1} parent=5 // pred_region
        %s1242 = ssub.s32 %s22, 2
        // Predicated region
        $region77: #{tpu_custom_call.1} parent=75 // pred_check
          %p1243 = pneg %p245
        $region78: #{tpu_custom_call.1} parent=75 // pred_check_branch
          %1245 = sbr.rel (%p1243) target = $region80
        $region79: #{tpu_custom_call.1} parent=75 // pred_region
          %s1246 = sand.u32 %s230, 1
          %s1247 = scalar_lea.sflag [#allocation4], %s1246
          %s1248 = sand.u32 %s230, 1
          %s1249 = smul.addr %s1248, 32
          %s1250 = scalar_lea.vmem [#allocation8], %s1249
          %1251 = dma.done %s1247, 512
        $region80: #{tpu_custom_call.1} parent=75 // pred_fallthru
          _
      $region76: #{tpu_custom_call.1} parent=5 // pred_fallthru
        _
    $region6: #{tpu_custom_call.1} parent=1 // loop_footer
      %s26 = sadd.s32 1, %s22
    $region7: #{tpu_custom_call.1} parent=1 // loop_footer_branch
      %21 = sbr.rel target = $region3
    $region8: #{tpu_custom_call.1} parent=1 // loop_exit
      _
    %1252 = vsyncpa [#allocation3], 1
    %s1253 = scalar_lea.sflag [#allocation3], 1
    %1254 = vsyncpa %s1253, 1
    %1255 = vsyncpa [#allocation6], 1
    %1256 = vsyncpa [#allocation4], 1
    %s1257 = scalar_lea.sflag [#allocation4], 1
    %1258 = vsyncpa %s1257, 1

</llo_original>
